<compile_context>
chip_gen: v7x
topology: tpu7x:2x2x1
jax: 0.10.0
libtpu: 0.0.40
codegen_flags: <defaults>
</compile_context>

<pallas_src>
import jax
import jax.numpy as jnp
import numpy as np
from jax.experimental import pallas as pl
from jax.experimental.pallas import tpu as pltpu


def _round_up(x, m):
    return (x + m - 1) // m * m


def _vnaw_kernel(a_ref, w_ref, c_ref, o_ref):
    # a_ref: (TM, K) bf16   — TM = TB * L_pad fused activation rows (TB whole sequences)
    # w_ref: (K, O)  bf16   — folded weight, constant block (VMEM-resident)
    # c_ref: (TM, O) f32    — folded per-position constant, constant block (VMEM-resident)
    # o_ref: (TM, O) f32
    acc = jnp.dot(a_ref[...], w_ref[...], preferred_element_type=jnp.float32)
    o_ref[...] = (acc + c_ref[...]).astype(o_ref.dtype)


def vnaw_forward(x, x_mark, params, *, target_rows=2048):
    """x: (B, L, C_enc) f32, x_mark: (B, L, C_mark) f32 -> (B, L, output_length) f32."""
    B, L, C_enc = x.shape
    C_mark = x_mark.shape[-1]
    O = params["wout"].shape[-1]
    if L != params["pos"].shape[0]:
        raise ValueError("sequence length L must equal pred_len (positional table length)")

    K = 3 * C_enc + C_mark
    L_pad = _round_up(L, 8)

    # ---- row tiling: TB whole sequences per grid step ------------------------------------
    TB = max(1, target_rows // L_pad)
    if B >= 2:
        TB = min(TB, (B + 1) // 2)      # >= 2 grid steps so v7x's two TensorCores both work
    else:
        TB = 1
    B_pad = _round_up(B, TB)
    TM = TB * L_pad
    M_pad = B_pad * L_pad
    grid = (B_pad // TB,)

    # ---- wrapper-side circular shifts + activation fusion (single pass) ------------------
    x_prev = jnp.roll(x, 1, axis=1)      # x[(t-1) mod L], per batch (no cross-batch leakage)
    x_next = jnp.roll(x, -1, axis=1)     # x[(t+1) mod L]
    a = jnp.concatenate([x_prev, x, x_next, x_mark], axis=-1)              # (B, L, K) f32
    a = jnp.pad(a, ((0, B_pad - B), (0, L_pad - L), (0, 0))).astype(jnp.bfloat16)
    a = a.reshape(M_pad, K)

    # ---- fold the entire linear chain through wout (network is linear) -------------------
    w_fused = jnp.concatenate(
        [params["wk_prev"], params["wk_cur"], params["wk_next"], params["wtemp"]], axis=0)
    w_total = (w_fused @ params["wout"]).astype(jnp.bfloat16)              # (K, O)
    const = params["pos"] @ params["wout"] + params["bout"]                # (L, O) f32
    const = jnp.pad(const, ((0, L_pad - L), (0, 0)))
    c_tile = jnp.tile(const, (TB, 1))                                      # (TM, O), tiny,
    # fetched ONCE (constant index_map) and kept VMEM-resident -> no per-row constant stream.

    bytes_accessed = (M_pad * K * 2) + (K * O * 2) + (TM * O * 4) + (M_pad * O * 4)
    out = pl.pallas_call(
        _vnaw_kernel,
        out_shape=jax.ShapeDtypeStruct((M_pad, O), jnp.float32),
        grid=grid,
        in_specs=[
            pl.BlockSpec((TM, K), lambda i: (i, 0)),     # activation rows (streamed)
            pl.BlockSpec((K, O), lambda i: (0, 0)),      # folded weight (resident)
            pl.BlockSpec((TM, O), lambda i: (0, 0)),     # folded constant (resident)
        ],
        out_specs=pl.BlockSpec((TM, O), lambda i: (i, 0)),   # unpadded O -> minimal writeback
        compiler_params=pltpu.CompilerParams(dimension_semantics=("parallel",)),
        cost_estimate=pl.CostEstimate(
            flops=2 * M_pad * K * O, transcendentals=0, bytes_accessed=bytes_accessed),
    )(a, w_total, c_tile)

    return out.reshape(B_pad, L_pad, O)[:B, :L, :]


def make_positional_embedding(max_len, d_model):
    pos = np.arange(max_len)[:, None].astype(np.float32)
    div = np.exp(np.arange(0, d_model, 2).astype(np.float32) * -(np.log(10000.0) / d_model))
    pe = np.zeros((max_len, d_model), dtype=np.float32)
    pe[:, 0::2] = np.sin(pos * div)
    pe[:, 1::2] = np.cos(pos * div)[:, : d_model // 2]   # safe for odd d_model
    return jnp.asarray(pe)


def init_params(key, *, pred_len, d_model, enc_feat, enc_temp, output_length):
    ks = jax.random.split(key, 6)
    s_conv = 1.0 / np.sqrt(3 * enc_feat)
    s_temp = 1.0 / np.sqrt(enc_temp)
    s_out = 1.0 / np.sqrt(d_model)
    return {
        # Conv1d weight (d_model, enc_feat, 3) split into three (enc_feat, d_model) taps.
        "wk_prev": jax.random.normal(ks[0], (enc_feat, d_model), jnp.float32) * s_conv,
        "wk_cur":  jax.random.normal(ks[1], (enc_feat, d_model), jnp.float32) * s_conv,
        "wk_next": jax.random.normal(ks[2], (enc_feat, d_model), jnp.float32) * s_conv,
        "wtemp":   jax.random.normal(ks[3], (enc_temp, d_model), jnp.float32) * s_temp,
        "wout":    jax.random.normal(ks[4], (d_model, output_length), jnp.float32) * s_out,
        "bout":    jax.random.normal(ks[5], (1, output_length), jnp.float32) * s_out,
        "pos":     make_positional_embedding(pred_len, d_model),
    }


def reference_forward(x, x_mark, params):
    """Pure-JAX f32 reference of the unfolded module math."""
    x_prev = jnp.roll(x, 1, axis=1)
    x_next = jnp.roll(x, -1, axis=1)
    emb = (x_prev @ params["wk_prev"] + x @ params["wk_cur"] + x_next @ params["wk_next"]
           + params["pos"][None] + x_mark @ params["wtemp"])
    return emb @ params["wout"] + params["bout"][None]


if __name__ == "__main__":
    # Small, module-consistent shapes.
    B, pred_len = 2, 8
    d_model, enc_feat, enc_temp, output_length = 32, 4, 5, 16

    key = jax.random.PRNGKey(0)
    kx, kxm, kp = jax.random.split(key, 3)
    x = jax.random.normal(kx, (B, pred_len, enc_feat), jnp.float32)
    x_mark = jax.random.normal(kxm, (B, pred_len, enc_temp), jnp.float32)

    params = init_params(kp, pred_len=pred_len, d_model=d_model,
                         enc_feat=enc_feat, enc_temp=enc_temp,
                         output_length=output_length)

    fwd = jax.jit(vnaw_forward)
    out = jax.block_until_ready(fwd(x, x_mark, params))

    ref = reference_forward(x, x_mark, params)
    # bf16 MXU operands + folded evaluation order -> loosened tolerance vs. the f32 reference.
    np.testing.assert_allclose(np.asarray(out), np.asarray(ref), rtol=3e-2, atol=3e-2)

    print("KERNEL_OK")
</pallas_src>

<mosaic_0001>
module attributes {stable_mosaic.version = 11 : i64} {
  func.func @_vnaw_kernel(%arg0: i32, %arg1: memref<8x17xbf16, #tpu.memory_space<vmem>>, %arg2: memref<17x16xbf16, #tpu.memory_space<vmem>>, %arg3: memref<8x16xf32, #tpu.memory_space<vmem>>, %arg4: memref<8x16xf32, #tpu.memory_space<vmem>>) attributes {dimension_semantics = [#tpu.dimension_semantics<parallel>], iteration_bounds = array<i64: 2>, scalar_prefetch = 0 : i64, scratch_operands = 0 : i64, tpu.core_type = #tpu.core_type<tc>, window_params = [{transform_indices = @transform_0, window_bounds = array<i64: 8, 17>}, {pipeline_mode = #tpu.pipeline_mode<synchronous>, transform_indices = @transform_1, window_bounds = array<i64: 17, 16>}, {pipeline_mode = #tpu.pipeline_mode<synchronous>, transform_indices = @transform_2, window_bounds = array<i64: 8, 16>}, {transform_indices = @transform_3, window_bounds = array<i64: 8, 16>}]} {
    %c0 = arith.constant 0 : index
    %c0_0 = arith.constant 0 : index
    %0 = vector.load %arg1[%c0, %c0_0] : memref<8x17xbf16, #tpu.memory_space<vmem>>, vector<8x17xbf16>
    %c0_1 = arith.constant 0 : index
    %c0_2 = arith.constant 0 : index
    %1 = vector.load %arg2[%c0_1, %c0_2] : memref<17x16xbf16, #tpu.memory_space<vmem>>, vector<17x16xbf16>
    %cst = arith.constant dense<0.000000e+00> : vector<8x16xf32>
    %2 = tpu.matmul %0, %1, %cst {dimension_numbers = #tpu.dot_dimension_numbers<[1], [0], [0], [1], [0, 0, 1, 1], [], []>} : vector<8x17xbf16>, vector<17x16xbf16>, vector<8x16xf32> -> vector<8x16xf32>
    %c0_3 = arith.constant 0 : index
    %c0_4 = arith.constant 0 : index
    %3 = vector.load %arg3[%c0_3, %c0_4] : memref<8x16xf32, #tpu.memory_space<vmem>>, vector<8x16xf32>
    %4 = arith.addf %2, %3 : vector<8x16xf32>
    %c0_5 = arith.constant 0 : index
    %c0_6 = arith.constant 0 : index
    %5 = vector.load %arg4[%c0_5, %c0_6] : memref<8x16xf32, #tpu.memory_space<vmem>>, vector<8x16xf32>
    tpu.vector_store %arg4[%c0_5, %c0_6], %4 {strides = array<i32>} : memref<8x16xf32, #tpu.memory_space<vmem>>, vector<8x16xf32>,
    return
  }
  func.func @transform_0(%arg0: i32) -> (i32, i32) {
    %c0_i32 = arith.constant 0 : i32
    %c0_i32_0 = arith.constant 0 : i32
    return %arg0, %c0_i32 : i32, i32
  }
  func.func @transform_1(%arg0: i32) -> (i32, i32) {
    %c0_i32 = arith.constant 0 : i32
    %c0_i32_0 = arith.constant 0 : i32
    %c0_i32_1 = arith.constant 0 : i32
    return %c0_i32, %c0_i32_0 : i32, i32
  }
  func.func @transform_2(%arg0: i32) -> (i32, i32) {
    %c0_i32 = arith.constant 0 : i32
    %c0_i32_0 = arith.constant 0 : i32
    %c0_i32_1 = arith.constant 0 : i32
    return %c0_i32, %c0_i32_0 : i32, i32
  }
  func.func @transform_3(%arg0: i32) -> (i32, i32) {
    %c0_i32 = arith.constant 0 : i32
    %c0_i32_0 = arith.constant 0 : i32
    return %arg0, %c0_i32 : i32, i32
  }
}

</mosaic_0001>

<llo_original>
// kernel: vnaw_forward.1
$region0: #{vnaw_forward.1}
  #allocation0 [shape = 'u32[]', space=smem, size = 0x4, offset = 0x4, fixed_abs, tag = 'smem constant byte address 0x4 - core index']
  #allocation1 [shape = 'u32[144,128]{1,0:T(1,128)}', space=vmem, size = 0x12000, scoped, tag = 'internal scratch']
  %s0 = inlined_call_operand.vmem [shape: bf16[16,17], index: 0, kind: input, shape index: {}]
  %s1 = inlined_call_operand.vmem [shape: bf16[17,16], index: 1, kind: input, shape index: {}]
  %s2 = inlined_call_operand.vmem [shape: f32[8,16], index: 2, kind: input, shape index: {}]
  %s3 = inlined_call_operand.hbm [shape: f32[16,16], index: 3, kind: output, shape index: {}]
  %s4 = sld [smem:[#allocation0]]
  $region45: #{vnaw_forward.1} parent=0
    _
  %s6 = ssub.s32 1, %s4
  %s7 = scalar_select 0, %s6, %s4
  $region1: #{vnaw_forward.1} parent=0
    #allocation2 [shape = 'u8[8192]{0}', space=vmem, size = 0x2000, scoped, tag = 'output window, operand 0']
    #allocation3 [shape = 's32[2]{0}', space=sflag, size = 0x8, scoped, tag = 'scoped memory for vnaw_forward.1']
    %8 = vsyncpa [#allocation3], 0
    %s9 = scalar_lea.sflag [#allocation3], 1
    %10 = vsyncpa %s9, 0
    loop: start=0, step=1, limit=4
    $region2: #{vnaw_forward.1} parent=1 // loop_pre_header
      _
    $region3: #{vnaw_forward.1} parent=1 // loop_header
      %s12 = sphi 0, %s16
      %p13 = scmp.ge.s32.totalorder %s12, 4
      %s22 = sphi 0, %s24
      %s25 = sphi 0, %s22
      %s26 = sphi 0, %s25
      %s42 = sphi 0, %s26
      %s46 = sphi 0, %s46
      %s48 = sphi 0, %s46
      %s49 = sphi 0, %s48
      %s63 = sphi 0, %s49
      %s67 = sphi 0, %s67
      %s69 = sphi 0, %s67
      %s70 = sphi 0, %s69
      %s84 = sphi 0, %s70
      %s90 = sphi 0, %s92
      %s93 = sphi 0, %s90
      %s94 = sphi 0, %s93
      %s110 = sphi 0, %s94
    $region4: #{vnaw_forward.1} parent=1 // loop_header_branch
      %15 = sbr.rel (%p13) target = $region8
    $region5: #{vnaw_forward.1} parent=1 // loop_body
      %s17 = ssub.s32 %s12, 1
      %s18 = ssub.s32 %s12, 2
      %s19 = sadd.s32 %s12, 1
      %s20 = ssub.s32 %s12, %s19
      %p21 = scmp.eq.s32.totalorder %s20, 0
      %s23 = sadd.s32 %s22, 1
      %s24 = scalar_select %p21, %s22, %s23
      %p27 = pneg %p21
      %p28 = scmp.eq.s32.totalorder %s12, 1
      %p29 = por %p27, %p28
      %p30 = scmp.ne.s32.totalorder %s22, %s25
      %p31 = scmp.eq.s32.totalorder %s12, 0
      %p32 = por %p30, %p31
      %p33 = scmp.ne.s32.totalorder %s22, %s25
      %p34 = scmp.eq.s32.totalorder %s17, 1
      %p35 = por %p33, %p34
      %p36 = scmp.ne.s32.totalorder %s25, %s26
      %p37 = scmp.eq.s32.totalorder %s17, 0
      %p38 = por %p36, %p37
      %p39 = scmp.ne.s32.totalorder %s25, %s26
      %p40 = scmp.eq.s32.totalorder %s18, 1
      %p41 = por %p39, %p40
      %p43 = scmp.ne.s32.totalorder %s26, %s42
      %p44 = scmp.eq.s32.totalorder %s18, 0
      %p45 = por %p43, %p44
      %s47 = sadd.s32 %s46, 1
      %p50 = scmp.eq.s32.totalorder %s12, 1
      %p51 = scmp.ne.s32.totalorder %s46, %s48
      %p52 = scmp.eq.s32.totalorder %s12, 0
      %p53 = por %p51, %p52
      %p54 = scmp.ne.s32.totalorder %s46, %s48
      %p55 = scmp.eq.s32.totalorder %s17, 1
      %p56 = por %p54, %p55
      %p57 = scmp.ne.s32.totalorder %s48, %s49
      %p58 = scmp.eq.s32.totalorder %s17, 0
      %p59 = por %p57, %p58
      %p60 = scmp.ne.s32.totalorder %s48, %s49
      %p61 = scmp.eq.s32.totalorder %s18, 1
      %p62 = por %p60, %p61
      %p64 = scmp.ne.s32.totalorder %s49, %s63
      %p65 = scmp.eq.s32.totalorder %s18, 0
      %p66 = por %p64, %p65
      %s68 = sadd.s32 %s67, 1
      %p71 = scmp.eq.s32.totalorder %s12, 1
      %p72 = scmp.ne.s32.totalorder %s67, %s69
      %p73 = scmp.eq.s32.totalorder %s12, 0
      %p74 = por %p72, %p73
      %p75 = scmp.ne.s32.totalorder %s67, %s69
      %p76 = scmp.eq.s32.totalorder %s17, 1
      %p77 = por %p75, %p76
      %p78 = scmp.ne.s32.totalorder %s69, %s70
      %p79 = scmp.eq.s32.totalorder %s17, 0
      %p80 = por %p78, %p79
      %p81 = scmp.ne.s32.totalorder %s69, %s70
      %p82 = scmp.eq.s32.totalorder %s18, 1
      %p83 = por %p81, %p82
      %p85 = scmp.ne.s32.totalorder %s70, %s84
      %p86 = scmp.eq.s32.totalorder %s18, 0
      %p87 = por %p85, %p86
      %s88 = ssub.s32 %s12, %s19
      %p89 = scmp.eq.s32.totalorder %s88, 0
      %s91 = sadd.s32 %s90, 1
      %s92 = scalar_select %p89, %s90, %s91
      %p95 = pneg %p89
      %p96 = scmp.eq.s32.totalorder %s12, 1
      %p97 = por %p95, %p96
      %p98 = scmp.ne.s32.totalorder %s90, %s93
      %p99 = scmp.eq.s32.totalorder %s12, 0
      %p100 = por %p98, %p99
      %p101 = scmp.ne.s32.totalorder %s90, %s93
      %p102 = scmp.eq.s32.totalorder %s17, 1
      %p103 = por %p101, %p102
      %p104 = scmp.ne.s32.totalorder %s93, %s94
      %p105 = scmp.eq.s32.totalorder %s17, 0
      %p106 = por %p104, %p105
      %p107 = scmp.ne.s32.totalorder %s93, %s94
      %p108 = scmp.eq.s32.totalorder %s18, 1
      %p109 = por %p107, %p108
      %p111 = scmp.ne.s32.totalorder %s94, %s110
      %p112 = scmp.eq.s32.totalorder %s18, 0
      %p113 = por %p111, %p112
      %p114 = scmp.le.s32.totalorder 1, %s12
      %p115 = scmp.lt.s32.totalorder %s12, 3
      %p116 = pnand %p114, %p115
      %p117 = pneg %p116
      // Predicated region
      $region9: #{vnaw_forward.1} parent=5 // pred_check
        _
      $region10: #{vnaw_forward.1} parent=5 // pred_check_branch
        %119 = sbr.rel (%p116) target = $region12
      $region11: #{vnaw_forward.1} parent=5 // pred_region
        %s120 = ssub.s32 %s12, 1
        // Predicated region
        $region13: #{vnaw_forward.1} parent=11 // pred_check
          %p121 = pneg %p59
        $region14: #{vnaw_forward.1} parent=11 // pred_check_branch
          %123 = sbr.rel (%p121) target = $region16
        $region15: #{vnaw_forward.1} parent=11 // pred_region
          _
        $region16: #{vnaw_forward.1} parent=11 // pred_fallthru
          _
        // Predicated region
        $region17: #{vnaw_forward.1} parent=11 // pred_check
          %p124 = pneg %p80
        $region18: #{vnaw_forward.1} parent=11 // pred_check_branch
          %126 = sbr.rel (%p124) target = $region20
        $region19: #{vnaw_forward.1} parent=11 // pred_region
          _
        $region20: #{vnaw_forward.1} parent=11 // pred_fallthru
          _
      $region12: #{vnaw_forward.1} parent=5 // pred_fallthru
        _
      %p127 = scmp.lt.s32.totalorder %s12, 2
      // Predicated region
      $region21: #{vnaw_forward.1} parent=5 // pred_check
        %p128 = pneg %p127
      $region22: #{vnaw_forward.1} parent=5 // pred_check_branch
        %130 = sbr.rel (%p128) target = $region24
      $region23: #{vnaw_forward.1} parent=5 // pred_region
        // Predicated region
        $region25: #{vnaw_forward.1} parent=23 // pred_check
          %p131 = pneg %p32
        $region26: #{vnaw_forward.1} parent=23 // pred_check_branch
          %133 = sbr.rel (%p131) target = $region28
        $region27: #{vnaw_forward.1} parent=23 // pred_region
          %p134 = scmp.lt.s32.totalorder %s12, 1
          %s135 = scalar_select %p134, %s12, 1
          %s136 = smul.addr %s135, 4
          %s137 = scalar_lea.vmem %s0, %s136
        $region28: #{vnaw_forward.1} parent=23 // pred_fallthru
          _
      $region24: #{vnaw_forward.1} parent=5 // pred_fallthru
        _
      %p138 = scmp.le.s32.totalorder 1, %s12
      %p139 = scmp.lt.s32.totalorder %s12, 3
      %p140 = pnand %p138, %p139
      %p141 = pneg %p140
      // Predicated region
      $region29: #{vnaw_forward.1} parent=5 // pred_check
        _
      $region30: #{vnaw_forward.1} parent=5 // pred_check_branch
        %143 = sbr.rel (%p140) target = $region32
      $region31: #{vnaw_forward.1} parent=5 // pred_region
        %s144 = ssub.s32 %s12, 1
        %p145 = scmp.lt.s32.totalorder %s17, 1
        %s146 = scalar_select %p145, %s17, 1
        %s147 = smul.addr %s146, 4
        %s148 = scalar_lea.vmem %s0, %s147
        %p149 = pneg %p38
        %p150 = pneg %p35
        %p151 = pneg %p59
        %p152 = pneg %p56
        %p153 = pneg %p80
        %p154 = pneg %p77
        %p155 = pneg %p106
        %p156 = pneg %p103
        %s157 = sand.u32 %s93, 1
        %s158 = scalar_lea.sflag [#allocation3], %s157
        %s159 = sand.u32 %s93, 1
        %s160 = smul.addr %s159, 8
        %s161 = scalar_lea.vmem [#allocation2], %s160
        %p162 = scmp.lt.s32.totalorder %s17, 1
        %s163 = scalar_select %p162, %s17, 1
        %s164 = smul.addr %s163, 4
        %s165 = scalar_lea.vmem %s0, %s164
        %v167 = vld [vmem:[%s165] sm:$0xf]
        %v168 = vld [vmem:[%s1] sm:$0xf]
        %v169 = vld [vmem:[%s1 + $0x4] sm:$0xf]
        %v170 = vld [vmem:[%s1 + $0x8] sm:$0x1]
        %v171 = vld [vmem:[%s2] sm:$0xff]
        %v175 = vunpack.c.l.b16 %v168
        %v176 = vunpack.c.l.b16 %v169
        %v177 = vunpack.c.l.b16 %v170
        %v178 = vpack.c.b16 %v176, %v175
        %v179 = vpack.c.b16 %v177, %v177
        %vm181 = vcmask 138240
        %v183 = vsel %vm181, %v167, 0
        %vm185 = vcmask 1040384
        %v186 = vsel 0, 4294967295, 65535
        %v187 = vsel %vm185, %v186, 0
        %v189 = vand.u32 %v179, %v187
        %191 = vmatprep.subr.bf16.mxu0 0
        %192 = vmatpush1.bf16.msra.mxu0 %v178
        %193 = vmatprep.subr.bf16.mxu0 0
        %194 = vmatpush1.bf16.msra.mxu0 %v189
        %195 = vmatprep.subr.bf16.mxu0 0
        %196 = vmatpush1.bf16.msra.mxu0 0
        %197 = vmatprep.subr.bf16.mxu0 0
        %198 = vmatpush1.bf16.msra.mxu0 0
        %199 = vmatprep.subr.bf16.mxu0 0
        %200 = vmatpush1.bf16.msra.mxu0 0
        %201 = vmatprep.subr.bf16.mxu0 0
        %202 = vmatpush1.bf16.msra.mxu0 0
        %203 = vmatprep.subr.bf16.mxu0 0
        %204 = vmatpush1.bf16.msra.mxu0 0
        %205 = vmatprep.subr.bf16.mxu0 0
        %206 = vmatpush1.bf16.msra.mxu0 0
        %207 = vmatprep.subr.bf16.mxu0 0
        %208 = vmatpush1.bf16.msra.mxu0 0
        %209 = vmatprep.subr.bf16.mxu0 0
        %210 = vmatpush1.bf16.msra.mxu0 0
        %211 = vmatprep.subr.bf16.mxu0 0
        %212 = vmatpush1.bf16.msra.mxu0 0
        %213 = vmatprep.subr.bf16.mxu0 0
        %214 = vmatpush1.bf16.msra.mxu0 0
        %215 = vmatprep.subr.bf16.mxu0 0
        %216 = vmatpush1.bf16.msra.mxu0 0
        %217 = vmatprep.subr.bf16.mxu0 0
        %218 = vmatpush1.bf16.msra.mxu0 0
        %219 = vmatprep.subr.bf16.mxu0 0
        %220 = vmatpush1.bf16.msra.mxu0 0
        %221 = vmatprep.subr.bf16.mxu0 0
        %222 = vmatpush1.bf16.msra.mxu0 0
        %223 = vmatprep.mubr.bf16.mxu0 0
        %224 = vmatmul.mubr.bf16.gmra.mrb[0].mxu0 %v183
        %v225 = vpop.f32.mrb[0].mxu0
        %v226 = vadd.f32 %v171, %v225
        %v227 = vpop.f32.mrb[0].mxu0
        %v228 = vpop.f32.mrb[0].mxu0
        %v229 = vpop.f32.mrb[0].mxu0
        %230 = vdwg.mxu0
        %vm231 = vcmask 130048
        %232 = vst.msk [vmem:[%s161] sm:$0xff] %vm231, %v226
        %s233 = sand.u32 %s93, 1
        %s234 = scalar_lea.sflag [#allocation3], %s233
        %s235 = sand.u32 %s93, 1
        %s236 = smul.addr %s235, 8
        %s237 = scalar_lea.vmem [#allocation2], %s236
        // Predicated region
        $region33: #{vnaw_forward.1} parent=31 // pred_check
          %p238 = pneg %p103
        $region34: #{vnaw_forward.1} parent=31 // pred_check_branch
          %240 = sbr.rel (%p238) target = $region36
        $region35: #{vnaw_forward.1} parent=31 // pred_region
          %s242 = ssub.s32 128, 128
          %243 = vsyncadd %s234, %s242
          %s244 = smul.addr %s17, 128
          %s245 = scalar_lea.hbm %s3, %s244
          %s247 = sshll.u32 %s237, 4
          %s248 = int_to_ptr.vmem [resolvable:$true] %s247
          %250 = dma.vmem_to_hbm [thread:$0]  %s248, 128, %s245, %s234
        $region36: #{vnaw_forward.1} parent=31 // pred_fallthru
          _
      $region32: #{vnaw_forward.1} parent=5 // pred_fallthru
        _
      %p251 = scmp.le.s32.totalorder 2, %s12
      // Predicated region
      $region37: #{vnaw_forward.1} parent=5 // pred_check
        %p252 = pneg %p251
      $region38: #{vnaw_forward.1} parent=5 // pred_check_branch
        %254 = sbr.rel (%p252) target = $region40
      $region39: #{vnaw_forward.1} parent=5 // pred_region
        %s255 = ssub.s32 %s12, 2
        // Predicated region
        $region41: #{vnaw_forward.1} parent=39 // pred_check
          %p256 = pneg %p109
        $region42: #{vnaw_forward.1} parent=39 // pred_check_branch
          %258 = sbr.rel (%p256) target = $region44
        $region43: #{vnaw_forward.1} parent=39 // pred_region
          %s259 = sand.u32 %s94, 1
          %s260 = scalar_lea.sflag [#allocation3], %s259
          %s261 = sand.u32 %s94, 1
          %s262 = smul.addr %s261, 8
          %s263 = scalar_lea.vmem [#allocation2], %s262
          %264 = dma.done %s260, 128
        $region44: #{vnaw_forward.1} parent=39 // pred_fallthru
          _
      $region40: #{vnaw_forward.1} parent=5 // pred_fallthru
        _
    $region6: #{vnaw_forward.1} parent=1 // loop_footer
      %s16 = sadd.s32 1, %s12
    $region7: #{vnaw_forward.1} parent=1 // loop_footer_branch
      %11 = sbr.rel target = $region3
    $region8: #{vnaw_forward.1} parent=1 // loop_exit
      _
    %265 = vsyncpa [#allocation3], 1
    %s266 = scalar_lea.sflag [#allocation3], 1
    %267 = vsyncpa %s266, 1

</llo_original>
